<compile_context>
chip_gen: v6e
topology: v6e:2x2x1
jax: 0.10.0
libtpu: 0.0.40
codegen_flags: <defaults>
</compile_context>

<pallas_src>
import functools

import jax
import jax.numpy as jnp
from jax.experimental import pallas as pl
from jax.experimental.pallas import tpu as pltpu

EPSILON = 1e-6

_VMEM_LIMIT_BYTES = 48 * 1024 * 1024   # below v7x's 64 MiB physical; above v5e/v6e scoped defaults
_VMEM_INPUT_BUDGET = 16 * 1024 * 1024  # budget for 2 inputs x 2 pipeline buffers per step
_MAX_TILE_ROWS = 2048


def _round_up(x, m):
    return ((x + m - 1) // m) * m


def _sublane_rows(dtype):
    # Native sublane packing: f32 -> 8 rows, bf16 -> 16, int8/fp8 -> 32.
    return 8 * max(1, 4 // jnp.dtype(dtype).itemsize)


def _f1_partial_kernel(yp_ref, yt_ref, tp_ref, s_ref):
    """Accumulate per-class TP = sum(yt*yp) and S = sum(yt+yp) over the batch.

    Input blocks are (groups, R, C); accumulators (output blocks, resident
    across the reduction grid axis) are (R, C).  Summing over the untiled
    leading axis is pure elementwise VPU work.
    """
    i = pl.program_id(1)

    @pl.when(i == 0)
    def _():
        tp_ref[...] = jnp.zeros_like(tp_ref)
        s_ref[...] = jnp.zeros_like(s_ref)

    yp = yp_ref[...].astype(jnp.float32)   # cast after load; stream native dtype from HBM
    yt = yt_ref[...].astype(jnp.float32)

    tp_ref[...] += jnp.sum(yt * yp, axis=0)
    s_ref[...] += jnp.sum(yt + yp, axis=0)


@functools.partial(jax.jit, static_argnames=("num_splits", "tile_n"))
def f1_loss(y_pred, y_true, epsilon=EPSILON, *, num_splits=2, tile_n=None):
    """Soft F1 loss. y_pred: probabilities (N, C), y_true: binary labels (N, C)."""
    assert y_pred.shape == y_true.shape and y_pred.ndim == 2
    n, c = y_pred.shape

    # Sublane packing requirement across both (possibly different) input dtypes.
    r = max(_sublane_rows(y_pred.dtype), _sublane_rows(y_true.dtype))

    # Leading "parallel" grid axis: uses both TensorCores on v7x, harmless elsewhere.
    num_splits = max(1, min(num_splits, pl.cdiv(n, r)))
    rows_per_split = pl.cdiv(n, num_splits)

    if tile_n is None:
        # Largest batch tile that fits the double-buffered streaming budget.
        bytes_per_row = 2 * c * (jnp.dtype(y_pred.dtype).itemsize
                                 + jnp.dtype(y_true.dtype).itemsize)
        t = _VMEM_INPUT_BUDGET // max(1, bytes_per_row)
        t = min(t, _MAX_TILE_ROWS, _round_up(rows_per_split, r))
        tile_n = max(r, (t // r) * r)
    assert tile_n % r == 0, "tile_n must be a multiple of the sublane packing"

    tiles_per_split = pl.cdiv(rows_per_split, tile_n)
    padded_n = num_splits * tiles_per_split * tile_n
    if padded_n != n:
        pad = padded_n - n
        # Zero rows contribute nothing to TP or S -> padding is exact.
        y_pred = jnp.pad(y_pred, ((0, pad), (0, 0)))
        y_true = jnp.pad(y_true, ((0, pad), (0, 0)))

    groups = tile_n // r
    # Free row-major reshape so the kernel never needs a cross-sublane reduce.
    yp3 = y_pred.reshape(padded_n // r, r, c)
    yt3 = y_true.reshape(padded_n // r, r, c)

    in_idx = lambda s, i: (s * tiles_per_split + i, 0, 0)
    out_idx = lambda s, i: (s, 0, 0)

    tp_parts, s_parts = pl.pallas_call(
        _f1_partial_kernel,
        out_shape=(
            jax.ShapeDtypeStruct((num_splits, r, c), jnp.float32),
            jax.ShapeDtypeStruct((num_splits, r, c), jnp.float32),
        ),
        grid_spec=pltpu.PrefetchScalarGridSpec(
            num_scalar_prefetch=0,
            grid=(num_splits, tiles_per_split),
            in_specs=[
                pl.BlockSpec((groups, r, c), in_idx),
                pl.BlockSpec((groups, r, c), in_idx),
            ],
            out_specs=(
                pl.BlockSpec((None, r, c), out_idx),
                pl.BlockSpec((None, r, c), out_idx),
            ),
        ),
        compiler_params=pltpu.CompilerParams(
            dimension_semantics=("parallel", "arbitrary"),
            vmem_limit_bytes=_VMEM_LIMIT_BYTES,
        ),
    )(yp3, yt3)

    # Tiny O(C) epilogue in plain JAX (f32 throughout; EPSILON would underflow in bf16).
    tp = jnp.sum(tp_parts, axis=(0, 1))
    s = jnp.sum(s_parts, axis=(0, 1))
    soft_f1 = (2.0 * tp + epsilon) / (s + epsilon)
    return 1.0 - jnp.mean(soft_f1)


def f1_loss_ref(y_pred, y_true, epsilon=EPSILON):
    """Pure-JAX reference matching the PyTorch forward exactly."""
    tp = (y_true * y_pred).sum(axis=0)
    fp = ((1.0 - y_true) * y_pred).sum(axis=0)
    fn = (y_true * (1.0 - y_pred)).sum(axis=0)
    soft_f1 = (2.0 * tp + epsilon) / (2.0 * tp + fp + fn + epsilon)
    return 1.0 - soft_f1.mean()


if __name__ == "__main__":
    key = jax.random.PRNGKey(0)
    k1, k2, k3, k4 = jax.random.split(key, 4)

    # Small demo shape: batch=16, classes=16.
    N, C = 16, 16
    y_pred = jax.nn.sigmoid(jax.random.normal(k1, (N, C), dtype=jnp.float32))
    y_true = (jax.random.uniform(k2, (N, C)) > 0.5).astype(jnp.float32)

    loss = jax.block_until_ready(f1_loss(y_pred, y_true))
    ref = f1_loss_ref(y_pred, y_true)
    assert jnp.allclose(loss, ref, atol=1e-5, rtol=1e-5), (loss, ref)

    # Ragged batch / odd class count (exercises the zero-padding path).
    N2, C2 = 37, 24
    y_pred2 = jax.nn.sigmoid(jax.random.normal(k3, (N2, C2), dtype=jnp.float32))
    y_true2 = (jax.random.uniform(k4, (N2, C2)) > 0.5).astype(jnp.float32)

    loss2 = jax.block_until_ready(f1_loss(y_pred2, y_true2))
    ref2 = f1_loss_ref(y_pred2, y_true2)
    assert jnp.allclose(loss2, ref2, atol=1e-5, rtol=1e-5), (loss2, ref2)

    print("KERNEL_OK")
</pallas_src>

<mosaic_0001>
module attributes {stable_mosaic.version = 11 : i64} {
  func.func @_f1_partial_kernel(%arg0: i32, %arg1: i32, %arg2: memref<1x8x16xf32, #tpu.memory_space<vmem>>, %arg3: memref<1x8x16xf32, #tpu.memory_space<vmem>>, %arg4: memref<1x8x16xf32, #tpu.memory_space<vmem>>, %arg5: memref<1x8x16xf32, #tpu.memory_space<vmem>>) attributes {dimension_semantics = [#tpu.dimension_semantics<parallel>, #tpu.dimension_semantics<arbitrary>], iteration_bounds = array<i64: 2, 1>, scalar_prefetch = 0 : i64, scratch_operands = 0 : i64, tpu.core_type = #tpu.core_type<tc>, window_params = [{transform_indices = @transform_0, window_bounds = array<i64: 1, 8, 16>}, {transform_indices = @transform_1, window_bounds = array<i64: 1, 8, 16>}, {transform_indices = @transform_2, window_bounds = array<i64: 1, 8, 16>}, {transform_indices = @transform_3, window_bounds = array<i64: 1, 8, 16>}]} {
    %c0_i32 = arith.constant 0 : i32
    %0 = arith.cmpi eq, %arg1, %c0_i32 : i32
    %1 = arith.extui %0 : i1 to i32
    %c0_i32_0 = arith.constant 0 : i32
    %2 = arith.cmpi ne, %1, %c0_i32_0 : i32
    scf.if %2 {
      %cst_19 = arith.constant 0.000000e+00 : f32
      %21 = vector.broadcast %cst_19 : f32 to vector<8x16xf32>
      %c0_20 = arith.constant 0 : index
      %c0_21 = arith.constant 0 : index
      %c0_22 = arith.constant 0 : index
      %22 = vector.load %arg4[%c0_20, %c0_21, %c0_22] : memref<1x8x16xf32, #tpu.memory_space<vmem>>, vector<1x8x16xf32>
      %23 = vector.shape_cast %22 : vector<1x8x16xf32> to vector<8x16xf32>
      %24 = vector.shape_cast %21 : vector<8x16xf32> to vector<1x8x16xf32>
      tpu.vector_store %arg4[%c0_20, %c0_21, %c0_22], %24 {strides = array<i32>} : memref<1x8x16xf32, #tpu.memory_space<vmem>>, vector<1x8x16xf32>,
      %cst_23 = arith.constant 0.000000e+00 : f32
      %25 = vector.broadcast %cst_23 : f32 to vector<8x16xf32>
      %c0_24 = arith.constant 0 : index
      %c0_25 = arith.constant 0 : index
      %c0_26 = arith.constant 0 : index
      %26 = vector.load %arg5[%c0_24, %c0_25, %c0_26] : memref<1x8x16xf32, #tpu.memory_space<vmem>>, vector<1x8x16xf32>
      %27 = vector.shape_cast %26 : vector<1x8x16xf32> to vector<8x16xf32>
      %28 = vector.shape_cast %25 : vector<8x16xf32> to vector<1x8x16xf32>
      tpu.vector_store %arg5[%c0_24, %c0_25, %c0_26], %28 {strides = array<i32>} : memref<1x8x16xf32, #tpu.memory_space<vmem>>, vector<1x8x16xf32>,
    } else {
    }
    %c0 = arith.constant 0 : index
    %c0_1 = arith.constant 0 : index
    %c0_2 = arith.constant 0 : index
    %3 = vector.load %arg2[%c0, %c0_1, %c0_2] : memref<1x8x16xf32, #tpu.memory_space<vmem>>, vector<1x8x16xf32>
    %c0_3 = arith.constant 0 : index
    %c0_4 = arith.constant 0 : index
    %c0_5 = arith.constant 0 : index
    %4 = vector.load %arg3[%c0_3, %c0_4, %c0_5] : memref<1x8x16xf32, #tpu.memory_space<vmem>>, vector<1x8x16xf32>
    %c0_6 = arith.constant 0 : index
    %c0_7 = arith.constant 0 : index
    %c0_8 = arith.constant 0 : index
    %5 = vector.load %arg4[%c0_6, %c0_7, %c0_8] : memref<1x8x16xf32, #tpu.memory_space<vmem>>, vector<1x8x16xf32>
    %6 = vector.shape_cast %5 : vector<1x8x16xf32> to vector<8x16xf32>
    %7 = arith.mulf %4, %3 : vector<1x8x16xf32>
    %cst = arith.constant dense<0.000000e+00> : vector<8x16xf32>
    %8 = vector.multi_reduction <add>, %7, %cst [0] : vector<1x8x16xf32> to vector<8x16xf32>
    %9 = arith.addf %6, %8 : vector<8x16xf32>
    %c0_9 = arith.constant 0 : index
    %c0_10 = arith.constant 0 : index
    %c0_11 = arith.constant 0 : index
    %10 = vector.load %arg4[%c0_9, %c0_10, %c0_11] : memref<1x8x16xf32, #tpu.memory_space<vmem>>, vector<1x8x16xf32>
    %11 = vector.shape_cast %10 : vector<1x8x16xf32> to vector<8x16xf32>
    %12 = vector.shape_cast %9 : vector<8x16xf32> to vector<1x8x16xf32>
    tpu.vector_store %arg4[%c0_9, %c0_10, %c0_11], %12 {strides = array<i32>} : memref<1x8x16xf32, #tpu.memory_space<vmem>>, vector<1x8x16xf32>,
    %c0_12 = arith.constant 0 : index
    %c0_13 = arith.constant 0 : index
    %c0_14 = arith.constant 0 : index
    %13 = vector.load %arg5[%c0_12, %c0_13, %c0_14] : memref<1x8x16xf32, #tpu.memory_space<vmem>>, vector<1x8x16xf32>
    %14 = vector.shape_cast %13 : vector<1x8x16xf32> to vector<8x16xf32>
    %15 = arith.addf %4, %3 : vector<1x8x16xf32>
    %cst_15 = arith.constant dense<0.000000e+00> : vector<8x16xf32>
    %16 = vector.multi_reduction <add>, %15, %cst_15 [0] : vector<1x8x16xf32> to vector<8x16xf32>
    %17 = arith.addf %14, %16 : vector<8x16xf32>
    %c0_16 = arith.constant 0 : index
    %c0_17 = arith.constant 0 : index
    %c0_18 = arith.constant 0 : index
    %18 = vector.load %arg5[%c0_16, %c0_17, %c0_18] : memref<1x8x16xf32, #tpu.memory_space<vmem>>, vector<1x8x16xf32>
    %19 = vector.shape_cast %18 : vector<1x8x16xf32> to vector<8x16xf32>
    %20 = vector.shape_cast %17 : vector<8x16xf32> to vector<1x8x16xf32>
    tpu.vector_store %arg5[%c0_16, %c0_17, %c0_18], %20 {strides = array<i32>} : memref<1x8x16xf32, #tpu.memory_space<vmem>>, vector<1x8x16xf32>,
    return
  }
  func.func @transform_0(%arg0: i32, %arg1: i32) -> (i32, i32, i32) {
    %c1_i32 = arith.constant 1 : i32
    %0 = arith.muli %arg0, %c1_i32 : i32
    %1 = arith.addi %0, %arg1 : i32
    %c0_i32 = arith.constant 0 : i32
    %c0_i32_0 = arith.constant 0 : i32
    %c0_i32_1 = arith.constant 0 : i32
    return %1, %c0_i32, %c0_i32_0 : i32, i32, i32
  }
  func.func @transform_1(%arg0: i32, %arg1: i32) -> (i32, i32, i32) {
    %c1_i32 = arith.constant 1 : i32
    %0 = arith.muli %arg0, %c1_i32 : i32
    %1 = arith.addi %0, %arg1 : i32
    %c0_i32 = arith.constant 0 : i32
    %c0_i32_0 = arith.constant 0 : i32
    %c0_i32_1 = arith.constant 0 : i32
    return %1, %c0_i32, %c0_i32_0 : i32, i32, i32
  }
  func.func @transform_2(%arg0: i32, %arg1: i32) -> (i32, i32, i32) {
    %c0_i32 = arith.constant 0 : i32
    %c0_i32_0 = arith.constant 0 : i32
    %c0_i32_1 = arith.constant 0 : i32
    return %arg0, %c0_i32, %c0_i32_0 : i32, i32, i32
  }
  func.func @transform_3(%arg0: i32, %arg1: i32) -> (i32, i32, i32) {
    %c0_i32 = arith.constant 0 : i32
    %c0_i32_0 = arith.constant 0 : i32
    %c0_i32_1 = arith.constant 0 : i32
    return %arg0, %c0_i32, %c0_i32_0 : i32, i32, i32
  }
}

</mosaic_0001>

<llo_original>
// kernel: f1_loss.1
$region0: #{f1_loss.1}
  #allocation0 [shape = 'u32[]', space=smem, size = 0x4, offset = 0x4, fixed_abs, tag = 'smem constant byte address 0x4 - core index']
  #allocation1 [shape = 'u32[144,128]{1,0:T(1,128)}', space=vmem, size = 0x12000, scoped, tag = 'internal scratch']
  %s0 = inlined_call_operand.hbm [shape: f32[2,8,16], index: 0, kind: input, shape index: {}]
  %s1 = inlined_call_operand.hbm [shape: f32[2,8,16], index: 1, kind: input, shape index: {}]
  %s2 = inlined_call_operand.vmem [shape: f32[2,8,16], index: 2, kind: output, shape index: {0}]
  %s3 = inlined_call_operand.vmem [shape: f32[2,8,16], index: 3, kind: output, shape index: {1}]
  %4 = xla_tuple %s2, %s3
  %s5 = sld [smem:[#allocation0]]
  $region61: #{f1_loss.1} parent=0
    _
  %s7 = ssub.s32 1, %s5
  %s8 = scalar_select 0, %s7, %s5
  $region1: #{f1_loss.1} parent=0
    #allocation2 [shape = 'u8[8192]{0}', space=vmem, size = 0x2000, scoped, tag = 'input window, operand 0']
    #allocation3 [shape = 's32[2]{0}', space=sflag, size = 0x8, scoped, tag = 'scoped memory for f1_loss.1']
    #allocation4 [shape = 'u8[8192]{0}', space=vmem, size = 0x2000, scoped, tag = 'input window, operand 1']
    #allocation5 [shape = 's32[2]{0}', space=sflag, size = 0x8, scoped, tag = 'scoped memory for f1_loss.1']
    %9 = vsyncpa [#allocation3], 0
    %s10 = scalar_lea.sflag [#allocation3], 1
    %11 = vsyncpa %s10, 0
    %12 = vsyncpa [#allocation5], 0
    %s13 = scalar_lea.sflag [#allocation5], 1
    %14 = vsyncpa %s13, 0
    loop: start=0, step=1, limit=4
    $region2: #{f1_loss.1} parent=1 // loop_pre_header
      _
    $region3: #{f1_loss.1} parent=1 // loop_header
      %s16 = sphi 0, %s20
      %p17 = scmp.ge.s32.totalorder %s16, 4
      %s23 = sphi 0, %s35
      %s24 = sphi 0, %s31
      %s25 = sphi 0, %s23
      %s26 = sphi 0, %s24
      %s27 = sphi 0, %s25
      %s28 = sphi 0, %s26
      %s40 = sphi 0, %s42
      %s43 = sphi 0, %s40
      %s44 = sphi 0, %s43
      %s60 = sphi 0, %s44
      %s68 = sphi 0, %s70
      %s71 = sphi 0, %s68
      %s72 = sphi 0, %s71
      %s88 = sphi 0, %s72
      %s94 = sphi 0, %s96
      %s97 = sphi 0, %s94
      %s98 = sphi 0, %s97
      %s114 = sphi 0, %s98
      %s120 = sphi 0, %s122
      %s123 = sphi 0, %s120
      %s124 = sphi 0, %s123
      %s140 = sphi 0, %s124
    $region4: #{f1_loss.1} parent=1 // loop_header_branch
      %19 = sbr.rel (%p17) target = $region8
    $region5: #{f1_loss.1} parent=1 // loop_body
      %s21 = ssub.s32 %s16, 1
      %s22 = ssub.s32 %s16, 2
      %s29 = sadd.s32 1, %s24
      %p30 = scmp.ge.s32.totalorder %s29, 1
      %s31 = scalar_select %p30, 0, %s29
      %s32 = sadd.s32 1, %s23
      %s33 = scalar_select %p30, %s32, %s23
      %p34 = scmp.ge.s32.totalorder %s33, 2
      %s35 = scalar_select %p34, 0, %s33
      %s36 = sadd.s32 %s23, %s24
      %s37 = sadd.s32 %s35, %s31
      %s38 = ssub.s32 %s36, %s37
      %p39 = scmp.eq.s32.totalorder %s38, 0
      %s41 = sadd.s32 %s40, 1
      %s42 = scalar_select %p39, %s40, %s41
      %p45 = pneg %p39
      %p46 = scmp.eq.s32.totalorder %s16, 1
      %p47 = por %p45, %p46
      %p48 = scmp.ne.s32.totalorder %s40, %s43
      %p49 = scmp.eq.s32.totalorder %s16, 0
      %p50 = por %p48, %p49
      %p51 = scmp.ne.s32.totalorder %s40, %s43
      %p52 = scmp.eq.s32.totalorder %s21, 1
      %p53 = por %p51, %p52
      %p54 = scmp.ne.s32.totalorder %s43, %s44
      %p55 = scmp.eq.s32.totalorder %s21, 0
      %p56 = por %p54, %p55
      %p57 = scmp.ne.s32.totalorder %s43, %s44
      %p58 = scmp.eq.s32.totalorder %s22, 1
      %p59 = por %p57, %p58
      %p61 = scmp.ne.s32.totalorder %s44, %s60
      %p62 = scmp.eq.s32.totalorder %s22, 0
      %p63 = por %p61, %p62
      %s64 = sadd.s32 %s23, %s24
      %s65 = sadd.s32 %s35, %s31
      %s66 = ssub.s32 %s64, %s65
      %p67 = scmp.eq.s32.totalorder %s66, 0
      %s69 = sadd.s32 %s68, 1
      %s70 = scalar_select %p67, %s68, %s69
      %p73 = pneg %p67
      %p74 = scmp.eq.s32.totalorder %s16, 1
      %p75 = por %p73, %p74
      %p76 = scmp.ne.s32.totalorder %s68, %s71
      %p77 = scmp.eq.s32.totalorder %s16, 0
      %p78 = por %p76, %p77
      %p79 = scmp.ne.s32.totalorder %s68, %s71
      %p80 = scmp.eq.s32.totalorder %s21, 1
      %p81 = por %p79, %p80
      %p82 = scmp.ne.s32.totalorder %s71, %s72
      %p83 = scmp.eq.s32.totalorder %s21, 0
      %p84 = por %p82, %p83
      %p85 = scmp.ne.s32.totalorder %s71, %s72
      %p86 = scmp.eq.s32.totalorder %s22, 1
      %p87 = por %p85, %p86
      %p89 = scmp.ne.s32.totalorder %s72, %s88
      %p90 = scmp.eq.s32.totalorder %s22, 0
      %p91 = por %p89, %p90
      %s92 = ssub.s32 %s23, %s35
      %p93 = scmp.eq.s32.totalorder %s92, 0
      %s95 = sadd.s32 %s94, 1
      %s96 = scalar_select %p93, %s94, %s95
      %p99 = pneg %p93
      %p100 = scmp.eq.s32.totalorder %s16, 1
      %p101 = por %p99, %p100
      %p102 = scmp.ne.s32.totalorder %s94, %s97
      %p103 = scmp.eq.s32.totalorder %s16, 0
      %p104 = por %p102, %p103
      %p105 = scmp.ne.s32.totalorder %s94, %s97
      %p106 = scmp.eq.s32.totalorder %s21, 1
      %p107 = por %p105, %p106
      %p108 = scmp.ne.s32.totalorder %s97, %s98
      %p109 = scmp.eq.s32.totalorder %s21, 0
      %p110 = por %p108, %p109
      %p111 = scmp.ne.s32.totalorder %s97, %s98
      %p112 = scmp.eq.s32.totalorder %s22, 1
      %p113 = por %p111, %p112
      %p115 = scmp.ne.s32.totalorder %s98, %s114
      %p116 = scmp.eq.s32.totalorder %s22, 0
      %p117 = por %p115, %p116
      %s118 = ssub.s32 %s23, %s35
      %p119 = scmp.eq.s32.totalorder %s118, 0
      %s121 = sadd.s32 %s120, 1
      %s122 = scalar_select %p119, %s120, %s121
      %p125 = pneg %p119
      %p126 = scmp.eq.s32.totalorder %s16, 1
      %p127 = por %p125, %p126
      %p128 = scmp.ne.s32.totalorder %s120, %s123
      %p129 = scmp.eq.s32.totalorder %s16, 0
      %p130 = por %p128, %p129
      %p131 = scmp.ne.s32.totalorder %s120, %s123
      %p132 = scmp.eq.s32.totalorder %s21, 1
      %p133 = por %p131, %p132
      %p134 = scmp.ne.s32.totalorder %s123, %s124
      %p135 = scmp.eq.s32.totalorder %s21, 0
      %p136 = por %p134, %p135
      %p137 = scmp.ne.s32.totalorder %s123, %s124
      %p138 = scmp.eq.s32.totalorder %s22, 1
      %p139 = por %p137, %p138
      %p141 = scmp.ne.s32.totalorder %s124, %s140
      %p142 = scmp.eq.s32.totalorder %s22, 0
      %p143 = por %p141, %p142
      %p144 = scmp.le.s32.totalorder 1, %s16
      %p145 = scmp.lt.s32.totalorder %s16, 3
      %p146 = pnand %p144, %p145
      %p147 = pneg %p146
      // Predicated region
      $region9: #{f1_loss.1} parent=5 // pred_check
        _
      $region10: #{f1_loss.1} parent=5 // pred_check_branch
        %149 = sbr.rel (%p146) target = $region12
      $region11: #{f1_loss.1} parent=5 // pred_region
        %s150 = ssub.s32 %s16, 1
      $region12: #{f1_loss.1} parent=5 // pred_fallthru
        _
      %p151 = scmp.lt.s32.totalorder %s16, 2
      // Predicated region
      $region13: #{f1_loss.1} parent=5 // pred_check
        %p152 = pneg %p151
      $region14: #{f1_loss.1} parent=5 // pred_check_branch
        %154 = sbr.rel (%p152) target = $region16
      $region15: #{f1_loss.1} parent=5 // pred_region
        // Predicated region
        $region17: #{f1_loss.1} parent=15 // pred_check
          %p155 = pneg %p50
        $region18: #{f1_loss.1} parent=15 // pred_check_branch
          %157 = sbr.rel (%p155) target = $region20
        $region19: #{f1_loss.1} parent=15 // pred_region
          %s158 = sand.u32 %s40, 1
          %s159 = scalar_lea.sflag [#allocation3], %s158
          %s160 = sand.u32 %s40, 1
          %s161 = smul.addr %s160, 8
          %s162 = scalar_lea.vmem [#allocation2], %s161
          %s163 = sadd.s32 %s23, %s24
          %s165 = ssub.s32 128, 128
          %166 = vsyncadd %s159, %s165
          %s167 = smul.addr %s163, 128
          %s168 = scalar_lea.hbm %s0, %s167
          %s170 = sshll.u32 %s162, 4
          %s171 = int_to_ptr.vmem [resolvable:$true] %s170
          %173 = dma.hbm_to_vmem [thread:$0]  %s168, 128, %s171, %s159
        $region20: #{f1_loss.1} parent=15 // pred_fallthru
          _
        // Predicated region
        $region21: #{f1_loss.1} parent=15 // pred_check
          %p174 = pneg %p78
        $region22: #{f1_loss.1} parent=15 // pred_check_branch
          %176 = sbr.rel (%p174) target = $region24
        $region23: #{f1_loss.1} parent=15 // pred_region
          %s177 = sand.u32 %s68, 1
          %s178 = scalar_lea.sflag [#allocation5], %s177
          %s179 = sand.u32 %s68, 1
          %s180 = smul.addr %s179, 8
          %s181 = scalar_lea.vmem [#allocation4], %s180
          %s182 = sadd.s32 %s23, %s24
          %s184 = ssub.s32 128, 128
          %185 = vsyncadd %s178, %s184
          %s186 = smul.addr %s182, 128
          %s187 = scalar_lea.hbm %s1, %s186
          %s189 = sshll.u32 %s181, 4
          %s190 = int_to_ptr.vmem [resolvable:$true] %s189
          %192 = dma.hbm_to_vmem [thread:$0]  %s187, 128, %s190, %s178
        $region24: #{f1_loss.1} parent=15 // pred_fallthru
          _
      $region16: #{f1_loss.1} parent=5 // pred_fallthru
        _
      %p193 = scmp.le.s32.totalorder 1, %s16
      %p194 = scmp.lt.s32.totalorder %s16, 3
      %p195 = pnand %p193, %p194
      %p196 = pneg %p195
      // Predicated region
      $region25: #{f1_loss.1} parent=5 // pred_check
        _
      $region26: #{f1_loss.1} parent=5 // pred_check_branch
        %198 = sbr.rel (%p195) target = $region28
      $region27: #{f1_loss.1} parent=5 // pred_region
        %s199 = ssub.s32 %s16, 1
        %s200 = sand.u32 %s43, 1
        %s201 = scalar_lea.sflag [#allocation3], %s200
        %s202 = sand.u32 %s43, 1
        %s203 = smul.addr %s202, 8
        %s204 = scalar_lea.vmem [#allocation2], %s203
        // Predicated region
        $region29: #{f1_loss.1} parent=27 // pred_check
          %p205 = pneg %p56
        $region30: #{f1_loss.1} parent=27 // pred_check_branch
          %207 = sbr.rel (%p205) target = $region32
        $region31: #{f1_loss.1} parent=27 // pred_region
          %208 = dma.done %s201, 128
        $region32: #{f1_loss.1} parent=27 // pred_fallthru
          _
        %s209 = sand.u32 %s71, 1
        %s210 = scalar_lea.sflag [#allocation5], %s209
        %s211 = sand.u32 %s71, 1
        %s212 = smul.addr %s211, 8
        %s213 = scalar_lea.vmem [#allocation4], %s212
        // Predicated region
        $region33: #{f1_loss.1} parent=27 // pred_check
          %p214 = pneg %p84
        $region34: #{f1_loss.1} parent=27 // pred_check_branch
          %216 = sbr.rel (%p214) target = $region36
        $region35: #{f1_loss.1} parent=27 // pred_region
          %217 = dma.done %s210, 128
        $region36: #{f1_loss.1} parent=27 // pred_fallthru
          _
        %s218 = sand.u32 %s43, 1
        %s219 = scalar_lea.sflag [#allocation3], %s218
        %s220 = sand.u32 %s43, 1
        %s221 = smul.addr %s220, 8
        %s222 = scalar_lea.vmem [#allocation2], %s221
        %p223 = pneg %p56
        %p224 = pneg %p53
        %s225 = sand.u32 %s71, 1
        %s226 = scalar_lea.sflag [#allocation5], %s225
        %s227 = sand.u32 %s71, 1
        %s228 = smul.addr %s227, 8
        %s229 = scalar_lea.vmem [#allocation4], %s228
        %p230 = pneg %p84
        %p231 = pneg %p81
        %p232 = pneg %p110
        %p233 = pneg %p107
        %p234 = scmp.lt.s32.totalorder %s25, 1
        %s235 = scalar_select %p234, %s25, 1
        %s236 = smul.addr %s235, 8
        %s237 = scalar_lea.vmem %s2, %s236
        %p238 = pneg %p136
        %p239 = pneg %p133
        %p240 = scmp.lt.s32.totalorder %s25, 1
        %s241 = scalar_select %p240, %s25, 1
        %s242 = smul.addr %s241, 8
        %s243 = scalar_lea.vmem %s3, %s242
        %s244 = sadd.s32 %s25, %s26
        %s245 = sadd.s32 %s25, %s26
        %p246 = scmp.lt.s32.totalorder %s25, 1
        %s247 = scalar_select %p246, %s25, 1
        %s248 = smul.addr %s247, 8
        %s249 = scalar_lea.vmem %s2, %s248
        %p250 = scmp.lt.s32.totalorder %s25, 1
        %s251 = scalar_select %p250, %s25, 1
        %s252 = smul.addr %s251, 8
        %s253 = scalar_lea.vmem %s3, %s252
        %p254 = scmp.eq.s32.totalorder %s26, 0
        // Predicated region
        $region37: #{f1_loss.1} parent=27 // pred_check
          %p255 = pneg %p254
        $region38: #{f1_loss.1} parent=27 // pred_check_branch
          %257 = sbr.rel (%p255) target = $region40
        $region39: #{f1_loss.1} parent=27 // pred_region
          %vm258 = vcmask 130048
          %259 = vst.msk [vmem:[%s249] sm:$0xff] %vm258, 0.0
          %260 = vst.msk [vmem:[%s253] sm:$0xff] %vm258, 0.0
        $region40: #{f1_loss.1} parent=27 // pred_fallthru
          _
        %v261 = vld [vmem:[%s204] sm:$0xff]
        %v262 = vld [vmem:[%s213] sm:$0xff]
        %v263 = vld [vmem:[%s249] sm:$0xff]
        %v264 = vmul.f32 %v262, %v261
        %v265 = vadd.f32 %v264, 0.0
        %v266 = vadd.f32 %v263, %v265
        %vm267 = vcmask 130048
        %268 = vst.msk [vmem:[%s249] sm:$0xff] %vm267, %v266
        %v269 = vld [vmem:[%s253] sm:$0xff]
        %v270 = vadd.f32 %v262, %v261
        %v271 = vadd.f32 %v270, 0.0
        %v272 = vadd.f32 %v269, %v271
        %273 = vst.msk [vmem:[%s253] sm:$0xff] %vm267, %v272
        %p274 = scmp.lt.s32.totalorder %s25, 1
        %s275 = scalar_select %p274, %s25, 1
        %s276 = smul.addr %s275, 8
        %s277 = scalar_lea.vmem %s2, %s276
        %p278 = scmp.lt.s32.totalorder %s25, 1
        %s279 = scalar_select %p278, %s25, 1
        %s280 = smul.addr %s279, 8
        %s281 = scalar_lea.vmem %s3, %s280
        // Predicated region
        $region41: #{f1_loss.1} parent=27 // pred_check
          %p282 = pneg %p107
        $region42: #{f1_loss.1} parent=27 // pred_check_branch
          %284 = sbr.rel (%p282) target = $region44
        $region43: #{f1_loss.1} parent=27 // pred_region
          _
        $region44: #{f1_loss.1} parent=27 // pred_fallthru
          _
        // Predicated region
        $region45: #{f1_loss.1} parent=27 // pred_check
          %p285 = pneg %p133
        $region46: #{f1_loss.1} parent=27 // pred_check_branch
          %287 = sbr.rel (%p285) target = $region48
        $region47: #{f1_loss.1} parent=27 // pred_region
          _
        $region48: #{f1_loss.1} parent=27 // pred_fallthru
          _
      $region28: #{f1_loss.1} parent=5 // pred_fallthru
        _
      %p288 = scmp.le.s32.totalorder 2, %s16
      // Predicated region
      $region49: #{f1_loss.1} parent=5 // pred_check
        %p289 = pneg %p288
      $region50: #{f1_loss.1} parent=5 // pred_check_branch
        %291 = sbr.rel (%p289) target = $region52
      $region51: #{f1_loss.1} parent=5 // pred_region
        %s292 = ssub.s32 %s16, 2
        // Predicated region
        $region53: #{f1_loss.1} parent=51 // pred_check
          %p293 = pneg %p113
        $region54: #{f1_loss.1} parent=51 // pred_check_branch
          %295 = sbr.rel (%p293) target = $region56
        $region55: #{f1_loss.1} parent=51 // pred_region
          %p296 = scmp.lt.s32.totalorder %s27, 1
          %s297 = scalar_select %p296, %s27, 1
          %s298 = smul.addr %s297, 8
          %s299 = scalar_lea.vmem %s2, %s298
        $region56: #{f1_loss.1} parent=51 // pred_fallthru
          _
        // Predicated region
        $region57: #{f1_loss.1} parent=51 // pred_check
          %p300 = pneg %p139
        $region58: #{f1_loss.1} parent=51 // pred_check_branch
          %302 = sbr.rel (%p300) target = $region60
        $region59: #{f1_loss.1} parent=51 // pred_region
          %p303 = scmp.lt.s32.totalorder %s27, 1
          %s304 = scalar_select %p303, %s27, 1
          %s305 = smul.addr %s304, 8
          %s306 = scalar_lea.vmem %s3, %s305
        $region60: #{f1_loss.1} parent=51 // pred_fallthru
          _
      $region52: #{f1_loss.1} parent=5 // pred_fallthru
        _
    $region6: #{f1_loss.1} parent=1 // loop_footer
      %s20 = sadd.s32 1, %s16
    $region7: #{f1_loss.1} parent=1 // loop_footer_branch
      %15 = sbr.rel target = $region3
    $region8: #{f1_loss.1} parent=1 // loop_exit
      _
    %307 = vsyncpa [#allocation3], 1
    %s308 = scalar_lea.sflag [#allocation3], 1
    %309 = vsyncpa %s308, 1
    %310 = vsyncpa [#allocation5], 1
    %s311 = scalar_lea.sflag [#allocation5], 1
    %312 = vsyncpa %s311, 1

</llo_original>
